<compile_context>
chip_gen: v6e
topology: v6e:2x2x1
jax: 0.10.0
libtpu: 0.0.40
codegen_flags: <defaults>
</compile_context>

<pallas_src>
import functools

import jax
import jax.numpy as jnp
from jax.experimental import pallas as pl
from jax.experimental.pallas import tpu as pltpu


def _pos_net(w):
    # Binary {0,1} indicator: (sign(w)+1)/2  (0.5 at exactly 0).
    return (jnp.sign(w) + 1.0) * 0.5


def fold_weights(pr, nr, pi, ni):
    """One-shot weight prep.  Fold + pack ONCE and cache across calls.

    posNet(p) - posNet(n) == 0.5*(sign(p) - sign(n)); we store the integer
    part sign(p)-sign(n) in {-2..2} as int8 (8x fewer weight HBM bytes than
    the original four f32 matrices) and defer the 0.5 to the kernel finalize.
    The fold is bit-exact, including the w == 0 case (the +0.5 constants
    cancel).
    """
    # TODO(synk): on v7x an fp8(e4m3) storage format would also be exact for
    # these values if the bf16-activation x fp8-weight MXU path is plumbed.
    d2r = (jnp.sign(pr) - jnp.sign(nr)).astype(jnp.int8)
    d2i = (jnp.sign(pi) - jnp.sign(ni)).astype(jnp.int8)
    return d2r, d2i


def _bct_linear_kernel(xr_ref, xi_ref, dr_ref, di_ref, yr_ref, yi_ref,
                       acc_r, acc_i, *, compute_dtype):
    k = pl.program_id(2)

    @pl.when(k == 0)
    def _():
        acc_r[...] = jnp.zeros_like(acc_r)
        acc_i[...] = jnp.zeros_like(acc_i)

    xr = xr_ref[...]          # already in compute_dtype (cast once in wrapper)
    xi = xi_ref[...]
    # int8 {-2..2} -> compute dtype: exact, cheap VPU filler under the MXU.
    dr = dr_ref[...].astype(compute_dtype)
    di = di_ref[...].astype(compute_dtype)

    # Contract the LAST dim of both operands: (tm,tk) x (tn,tk) -> (tm,tn);
    # no explicit transpose, no XLU traffic.
    dn = (((1,), (1,)), ((), ()))

    def lin(x, w):
        return jax.lax.dot_general(x, w, dimension_numbers=dn,
                                   preferred_element_type=jnp.float32)

    # TODO(synk): Gauss 3-matmul form (t1=xr@dr, t2=xi@di, t3=(xr+xi)@(dr+di))
    # saves 25% MXU MACs; only worth switching once the kernel is MXU-bound
    # (very large batch, especially on v5e).
    acc_r[...] += lin(xr, dr) - lin(xi, di)
    acc_i[...] += lin(xr, di) + lin(xi, dr)

    @pl.when(k == pl.num_programs(2) - 1)
    def _():
        # Deferred 0.5 from posNet(p) - posNet(n) == 0.5*(sign(p)-sign(n)).
        yr_ref[...] = (0.5 * acc_r[...]).astype(yr_ref.dtype)
        yi_ref[...] = (0.5 * acc_i[...]).astype(yi_ref.dtype)


def _round_up(x, m):
    return ((x + m - 1) // m) * m


def bct_linear_folded(xr, xi, d2r, d2i, *, compute_dtype=jnp.bfloat16,
                      out_dtype=None, tm=256, tn=256, tk=1024):
    """Complex binary linear on pre-folded int8 weights. Returns (yr, yi)."""
    B, in_f = xr.shape
    out_f = d2r.shape[0]
    assert xi.shape == (B, in_f)
    assert d2r.shape == (out_f, in_f) and d2i.shape == (out_f, in_f)
    if out_dtype is None:
        out_dtype = xr.dtype

    # Clamp tiles to the (8,128)-rounded problem dims so toy shapes stay a
    # single block; large shapes get real tiling.
    tm = min(tm, _round_up(B, 8))
    tn = min(tn, _round_up(out_f, 128))
    tk = min(tk, _round_up(in_f, 128))
    # v7x has 2 TensorCores: when the whole batch fits one i-tile, make sure
    # the parallel j axis exposes >= 2 tiles so both cores get work.
    pN128 = _round_up(out_f, 128)
    if _round_up(B, 8) <= tm and tn >= pN128 and pN128 >= 256:
        tn = 128

    pB = _round_up(B, tm)
    pN = _round_up(out_f, tn)
    pK = _round_up(in_f, tk)

    # Cast activations ONCE here (halves x HBM bytes for bf16 and removes
    # per-step VPU casts); folded int8 weights are exact in bf16/f32.
    xr = xr.astype(compute_dtype)
    xi = xi.astype(compute_dtype)

    def pad2(a, rows, cols):
        if a.shape == (rows, cols):
            return a
        return jnp.pad(a, ((0, rows - a.shape[0]), (0, cols - a.shape[1])))

    # Zero padding is exact: padded int8 weights contribute 0, padded
    # activation columns are 0, extra output rows/cols are sliced off below.
    xr_p = pad2(xr, pB, pK)
    xi_p = pad2(xi, pB, pK)
    dr_p = pad2(d2r, pN, pK)
    di_p = pad2(d2i, pN, pK)

    grid = (pB // tm, pN // tn, pK // tk)

    x_spec = pl.BlockSpec((tm, tk), lambda i, j, k: (i, k))
    w_spec = pl.BlockSpec((tn, tk), lambda i, j, k: (j, k))   # independent of i
    o_spec = pl.BlockSpec((tm, tn), lambda i, j, k: (i, j))   # resident over k
    # If a profile shows exposed weight DMA, try deeper buffering:
    #   pl.BlockSpec((tn, tk), lambda i,j,k:(j,k), pipeline_mode=pl.Buffered(3))

    kernel = functools.partial(_bct_linear_kernel, compute_dtype=compute_dtype)

    yr_p, yi_p = pl.pallas_call(
        kernel,
        out_shape=(
            jax.ShapeDtypeStruct((pB, pN), out_dtype),
            jax.ShapeDtypeStruct((pB, pN), out_dtype),
        ),
        grid_spec=pltpu.PrefetchScalarGridSpec(
            num_scalar_prefetch=0,
            grid=grid,
            in_specs=[x_spec, x_spec, w_spec, w_spec],
            out_specs=(o_spec, o_spec),
            scratch_shapes=[pltpu.VMEM((tm, tn), jnp.float32),
                            pltpu.VMEM((tm, tn), jnp.float32)],
        ),
        compiler_params=pltpu.CompilerParams(
            dimension_semantics=("parallel", "parallel", "arbitrary")),
    )(xr_p, xi_p, dr_p, di_p)

    return yr_p[:B, :out_f], yi_p[:B, :out_f]


def bct_linear(xr, xi, pr, nr, pi, ni, **kwargs):
    """Convenience wrapper: fold raw f32 weights then run the matmul kernel.

    For repeated calls (inference), call fold_weights() once and reuse the
    int8 (d2r, d2i) with bct_linear_folded -- re-folding four f32 matrices per
    call costs HBM traffic comparable to the kernel itself at small batch.
    """
    d2r, d2i = fold_weights(pr, nr, pi, ni)
    return bct_linear_folded(xr, xi, d2r, d2i, **kwargs)


def _reference(xr, xi, pr, nr, pi, ni):
    qpr, qnr, qpi, qni = map(_pos_net, (pr, nr, pi, ni))
    lin = lambda x, w: x @ w.T
    yr = lin(xr, qpr) - lin(xr, qnr) - lin(xi, qpi) + lin(xi, qni)
    yi = lin(xr, qpi) - lin(xr, qni) + lin(xi, qpr) - lin(xi, qnr)
    return yr, yi


def _make_inputs(B, in_f, out_f, key):
    ks = jax.random.split(key, 6)
    xr = jax.random.normal(ks[0], (B, in_f), dtype=jnp.float32)
    xi = jax.random.normal(ks[1], (B, in_f), dtype=jnp.float32)
    # nn.Linear weights, re-initialized uniform(-1, 1) as in the module.
    pr, nr, pi, ni = (jax.random.uniform(k, (out_f, in_f), minval=-1.0, maxval=1.0)
                      for k in ks[2:])
    return xr, xi, pr, nr, pi, ni


if __name__ == "__main__":
    key0, key1 = jax.random.split(jax.random.PRNGKey(0))

    # --- 1) Small single-block case, exact f32 compute path. ---------------
    xr, xi, pr, nr, pi, ni = _make_inputs(8, 32, 32, key0)
    d2r, d2i = fold_weights(pr, nr, pi, ni)          # one-shot, cacheable
    run_f32 = jax.jit(functools.partial(bct_linear_folded,
                                        compute_dtype=jnp.float32))
    yr, yi = run_f32(xr, xi, d2r, d2i)
    jax.block_until_ready((yr, yi))
    yr_ref, yi_ref = _reference(xr, xi, pr, nr, pi, ni)
    assert yr.shape == (8, 32) and yi.shape == (8, 32)
    assert jnp.allclose(yr, yr_ref, atol=1e-4, rtol=1e-4), "yr mismatch (f32)"
    assert jnp.allclose(yi, yi_ref, atol=1e-4, rtol=1e-4), "yi mismatch (f32)"

    # --- 2) Default bf16 compute path (lossy on activations only). ---------
    yr_b, yi_b = jax.jit(bct_linear)(xr, xi, pr, nr, pi, ni)
    jax.block_until_ready((yr_b, yi_b))
    assert jnp.allclose(yr_b, yr_ref, atol=1e-1, rtol=2e-2), "yr mismatch (bf16)"
    assert jnp.allclose(yi_b, yi_ref, atol=1e-1, rtol=2e-2), "yi mismatch (bf16)"

    # --- 3) Multi-block case: padding, k-accumulation, init/finalize paths. -
    xr2, xi2, pr2, nr2, pi2, ni2 = _make_inputs(16, 300, 200, key1)
    d2r2, d2i2 = fold_weights(pr2, nr2, pi2, ni2)
    run_mb = jax.jit(functools.partial(bct_linear_folded,
                                       compute_dtype=jnp.float32,
                                       tm=8, tn=128, tk=128))   # grid (2,2,3)
    yr2, yi2 = run_mb(xr2, xi2, d2r2, d2i2)
    jax.block_until_ready((yr2, yi2))
    yr2_ref, yi2_ref = _reference(xr2, xi2, pr2, nr2, pi2, ni2)
    assert yr2.shape == (16, 200) and yi2.shape == (16, 200)
    assert jnp.allclose(yr2, yr2_ref, atol=2e-3, rtol=2e-4), "yr mismatch (multi-block)"
    assert jnp.allclose(yi2, yi2_ref, atol=2e-3, rtol=2e-4), "yi mismatch (multi-block)"

    print("KERNEL_OK")
</pallas_src>

<mosaic_0001>
module attributes {stable_mosaic.version = 11 : i64} {
  func.func @_bct_linear_kernel(%arg0: i32, %arg1: i32, %arg2: i32, %arg3: memref<8x128xf32, #tpu.memory_space<vmem>>, %arg4: memref<8x128xf32, #tpu.memory_space<vmem>>, %arg5: memref<128x128xi8, #tpu.memory_space<vmem>>, %arg6: memref<128x128xi8, #tpu.memory_space<vmem>>, %arg7: memref<8x128xf32, #tpu.memory_space<vmem>>, %arg8: memref<8x128xf32, #tpu.memory_space<vmem>>, %arg9: memref<8x128xf32, #tpu.memory_space<vmem>>, %arg10: memref<8x128xf32, #tpu.memory_space<vmem>>) attributes {dimension_semantics = [#tpu.dimension_semantics<parallel>, #tpu.dimension_semantics<parallel>, #tpu.dimension_semantics<arbitrary>], iteration_bounds = array<i64: 1, 1, 1>, scalar_prefetch = 0 : i64, scratch_operands = 2 : i64, tpu.core_type = #tpu.core_type<tc>, window_params = [{transform_indices = @transform_0, window_bounds = array<i64: 8, 128>}, {transform_indices = @transform_1, window_bounds = array<i64: 8, 128>}, {transform_indices = @transform_2, window_bounds = array<i64: 128, 128>}, {transform_indices = @transform_3, window_bounds = array<i64: 128, 128>}, {transform_indices = @transform_4, window_bounds = array<i64: 8, 128>}, {transform_indices = @transform_5, window_bounds = array<i64: 8, 128>}]} {
    %c0_i32 = arith.constant 0 : i32
    %0 = arith.cmpi eq, %arg2, %c0_i32 : i32
    %1 = arith.extui %0 : i1 to i32
    %c0_i32_0 = arith.constant 0 : i32
    %2 = arith.cmpi ne, %1, %c0_i32_0 : i32
    scf.if %2 {
      %cst_21 = arith.constant 0.000000e+00 : f32
      %24 = vector.broadcast %cst_21 : f32 to vector<8x128xf32>
      %c0_22 = arith.constant 0 : index
      %c0_23 = arith.constant 0 : index
      %25 = vector.load %arg9[%c0_22, %c0_23] : memref<8x128xf32, #tpu.memory_space<vmem>>, vector<8x128xf32>
      tpu.vector_store %arg9[%c0_22, %c0_23], %24 {strides = array<i32>} : memref<8x128xf32, #tpu.memory_space<vmem>>, vector<8x128xf32>,
      %cst_24 = arith.constant 0.000000e+00 : f32
      %26 = vector.broadcast %cst_24 : f32 to vector<8x128xf32>
      %c0_25 = arith.constant 0 : index
      %c0_26 = arith.constant 0 : index
      %27 = vector.load %arg10[%c0_25, %c0_26] : memref<8x128xf32, #tpu.memory_space<vmem>>, vector<8x128xf32>
      tpu.vector_store %arg10[%c0_25, %c0_26], %26 {strides = array<i32>} : memref<8x128xf32, #tpu.memory_space<vmem>>, vector<8x128xf32>,
    } else {
    }
    %c0 = arith.constant 0 : index
    %c0_1 = arith.constant 0 : index
    %3 = vector.load %arg3[%c0, %c0_1] : memref<8x128xf32, #tpu.memory_space<vmem>>, vector<8x128xf32>
    %c0_2 = arith.constant 0 : index
    %c0_3 = arith.constant 0 : index
    %4 = vector.load %arg4[%c0_2, %c0_3] : memref<8x128xf32, #tpu.memory_space<vmem>>, vector<8x128xf32>
    %c0_4 = arith.constant 0 : index
    %c0_5 = arith.constant 0 : index
    %5 = vector.load %arg5[%c0_4, %c0_5] : memref<128x128xi8, #tpu.memory_space<vmem>>, vector<128x128xi8>
    %6 = arith.sitofp %5 : vector<128x128xi8> to vector<128x128xf32>
    %c0_6 = arith.constant 0 : index
    %c0_7 = arith.constant 0 : index
    %7 = vector.load %arg6[%c0_6, %c0_7] : memref<128x128xi8, #tpu.memory_space<vmem>>, vector<128x128xi8>
    %8 = arith.sitofp %7 : vector<128x128xi8> to vector<128x128xf32>
    %c0_8 = arith.constant 0 : index
    %c0_9 = arith.constant 0 : index
    %9 = vector.load %arg9[%c0_8, %c0_9] : memref<8x128xf32, #tpu.memory_space<vmem>>, vector<8x128xf32>
    %cst = arith.constant dense<0.000000e+00> : vector<8x128xf32>
    %10 = tpu.matmul %3, %6, %cst {dimension_numbers = #tpu.dot_dimension_numbers<[1], [1], [0], [0], [0, 0, 1, 0], [], []>} : vector<8x128xf32>, vector<128x128xf32>, vector<8x128xf32> -> vector<8x128xf32>
    %cst_10 = arith.constant dense<0.000000e+00> : vector<8x128xf32>
    %11 = tpu.matmul %4, %8, %cst_10 {dimension_numbers = #tpu.dot_dimension_numbers<[1], [1], [0], [0], [0, 0, 1, 0], [], []>} : vector<8x128xf32>, vector<128x128xf32>, vector<8x128xf32> -> vector<8x128xf32>
    %12 = arith.subf %10, %11 : vector<8x128xf32>
    %13 = arith.addf %9, %12 : vector<8x128xf32>
    %c0_11 = arith.constant 0 : index
    %c0_12 = arith.constant 0 : index
    %14 = vector.load %arg9[%c0_11, %c0_12] : memref<8x128xf32, #tpu.memory_space<vmem>>, vector<8x128xf32>
    tpu.vector_store %arg9[%c0_11, %c0_12], %13 {strides = array<i32>} : memref<8x128xf32, #tpu.memory_space<vmem>>, vector<8x128xf32>,
    %c0_13 = arith.constant 0 : index
    %c0_14 = arith.constant 0 : index
    %15 = vector.load %arg10[%c0_13, %c0_14] : memref<8x128xf32, #tpu.memory_space<vmem>>, vector<8x128xf32>
    %cst_15 = arith.constant dense<0.000000e+00> : vector<8x128xf32>
    %16 = tpu.matmul %3, %8, %cst_15 {dimension_numbers = #tpu.dot_dimension_numbers<[1], [1], [0], [0], [0, 0, 1, 0], [], []>} : vector<8x128xf32>, vector<128x128xf32>, vector<8x128xf32> -> vector<8x128xf32>
    %cst_16 = arith.constant dense<0.000000e+00> : vector<8x128xf32>
    %17 = tpu.matmul %4, %6, %cst_16 {dimension_numbers = #tpu.dot_dimension_numbers<[1], [1], [0], [0], [0, 0, 1, 0], [], []>} : vector<8x128xf32>, vector<128x128xf32>, vector<8x128xf32> -> vector<8x128xf32>
    %18 = arith.addf %16, %17 : vector<8x128xf32>
    %19 = arith.addf %15, %18 : vector<8x128xf32>
    %c0_17 = arith.constant 0 : index
    %c0_18 = arith.constant 0 : index
    %20 = vector.load %arg10[%c0_17, %c0_18] : memref<8x128xf32, #tpu.memory_space<vmem>>, vector<8x128xf32>
    tpu.vector_store %arg10[%c0_17, %c0_18], %19 {strides = array<i32>} : memref<8x128xf32, #tpu.memory_space<vmem>>, vector<8x128xf32>,
    %c0_i32_19 = arith.constant 0 : i32
    %21 = arith.cmpi eq, %arg2, %c0_i32_19 : i32
    %22 = arith.extui %21 : i1 to i32
    %c0_i32_20 = arith.constant 0 : i32
    %23 = arith.cmpi ne, %22, %c0_i32_20 : i32
    scf.if %23 {
      %c0_21 = arith.constant 0 : index
      %c0_22 = arith.constant 0 : index
      %24 = vector.load %arg9[%c0_21, %c0_22] : memref<8x128xf32, #tpu.memory_space<vmem>>, vector<8x128xf32>
      %cst_23 = arith.constant 5.000000e-01 : f32
      %25 = vector.broadcast %cst_23 : f32 to vector<8x128xf32>
      %26 = arith.mulf %25, %24 : vector<8x128xf32>
      %c0_24 = arith.constant 0 : index
      %c0_25 = arith.constant 0 : index
      %27 = vector.load %arg7[%c0_24, %c0_25] : memref<8x128xf32, #tpu.memory_space<vmem>>, vector<8x128xf32>
      tpu.vector_store %arg7[%c0_24, %c0_25], %26 {strides = array<i32>} : memref<8x128xf32, #tpu.memory_space<vmem>>, vector<8x128xf32>,
      %c0_26 = arith.constant 0 : index
      %c0_27 = arith.constant 0 : index
      %28 = vector.load %arg10[%c0_26, %c0_27] : memref<8x128xf32, #tpu.memory_space<vmem>>, vector<8x128xf32>
      %cst_28 = arith.constant 5.000000e-01 : f32
      %29 = vector.broadcast %cst_28 : f32 to vector<8x128xf32>
      %30 = arith.mulf %29, %28 : vector<8x128xf32>
      %c0_29 = arith.constant 0 : index
      %c0_30 = arith.constant 0 : index
      %31 = vector.load %arg8[%c0_29, %c0_30] : memref<8x128xf32, #tpu.memory_space<vmem>>, vector<8x128xf32>
      tpu.vector_store %arg8[%c0_29, %c0_30], %30 {strides = array<i32>} : memref<8x128xf32, #tpu.memory_space<vmem>>, vector<8x128xf32>,
    } else {
    }
    return
  }
  func.func @transform_0(%arg0: i32, %arg1: i32, %arg2: i32) -> (i32, i32) {
    %c0_i32 = arith.constant 0 : i32
    return %arg0, %arg2 : i32, i32
  }
  func.func @transform_1(%arg0: i32, %arg1: i32, %arg2: i32) -> (i32, i32) {
    %c0_i32 = arith.constant 0 : i32
    return %arg0, %arg2 : i32, i32
  }
  func.func @transform_2(%arg0: i32, %arg1: i32, %arg2: i32) -> (i32, i32) {
    %c0_i32 = arith.constant 0 : i32
    return %arg1, %arg2 : i32, i32
  }
  func.func @transform_3(%arg0: i32, %arg1: i32, %arg2: i32) -> (i32, i32) {
    %c0_i32 = arith.constant 0 : i32
    return %arg1, %arg2 : i32, i32
  }
  func.func @transform_4(%arg0: i32, %arg1: i32, %arg2: i32) -> (i32, i32) {
    %c0_i32 = arith.constant 0 : i32
    return %arg0, %arg1 : i32, i32
  }
  func.func @transform_5(%arg0: i32, %arg1: i32, %arg2: i32) -> (i32, i32) {
    %c0_i32 = arith.constant 0 : i32
    return %arg0, %arg1 : i32, i32
  }
}

</mosaic_0001>

<llo_original>
// kernel: bct_linear_folded.1
$region0: #{bct_linear_folded.1}
  #allocation0 [shape = 'u32[]', space=smem, size = 0x4, offset = 0x4, fixed_abs, tag = 'smem constant byte address 0x4 - core index']
  #allocation1 [shape = 'u32[144,128]{1,0:T(1,128)}', space=vmem, size = 0x12000, scoped, tag = 'internal scratch']
  #allocation2 [shape = 'f32[8,128]{1,0:T(8,128)}', space=vmem, size = 0x1000, scoped, tag = 'scratch operand']
  #allocation3 [shape = 'f32[8,128]{1,0:T(8,128)}', space=vmem, size = 0x1000, scoped, tag = 'scratch operand']
  %s0 = inlined_call_operand.vmem [shape: f32[8,128], index: 0, kind: input, shape index: {}]
  %s1 = inlined_call_operand.vmem [shape: f32[8,128], index: 1, kind: input, shape index: {}]
  %s2 = inlined_call_operand.vmem [shape: s8[128,128], index: 2, kind: input, shape index: {}]
  %s3 = inlined_call_operand.vmem [shape: s8[128,128], index: 3, kind: input, shape index: {}]
  %s4 = inlined_call_operand.hbm [shape: f32[8,128], index: 4, kind: output, shape index: {0}]
  %s5 = inlined_call_operand.hbm [shape: f32[8,128], index: 5, kind: output, shape index: {1}]
  %6 = xla_tuple %s4, %s5
  %s7 = sld [smem:[#allocation0]]
  $region42: #{bct_linear_folded.1} parent=0
    _
  %s9 = ssub.s32 1, %s7
  %s10 = scalar_select 0, %s9, %s7
  $region1: #{bct_linear_folded.1} parent=0
    #allocation4 [shape = 'u8[4096]{0}', space=vmem, size = 0x1000, scoped, tag = 'output window, operand 0, single buffered']
    #allocation5 [shape = 's32[1]{0}', space=sflag, size = 0x4, scoped, tag = 'scoped memory for bct_linear_folded.1']
    #allocation6 [shape = 'u8[4096]{0}', space=vmem, size = 0x1000, scoped, tag = 'output window, operand 1, single buffered']
    #allocation7 [shape = 's32[1]{0}', space=sflag, size = 0x4, scoped, tag = 'scoped memory for bct_linear_folded.1']
    %11 = vsyncpa [#allocation5], 0
    %12 = vsyncpa [#allocation7], 0
    // Predicated region
    $region2: #{bct_linear_folded.1} parent=1 // pred_check
      _
    $region3: #{bct_linear_folded.1} parent=1 // pred_check_branch
      %14 = sbr.rel (0) target = $region5
    $region4: #{bct_linear_folded.1} parent=1 // pred_region
      _
    $region5: #{bct_linear_folded.1} parent=1 // pred_fallthru
      _
    // Predicated region
    $region6: #{bct_linear_folded.1} parent=1 // pred_check
      _
    $region7: #{bct_linear_folded.1} parent=1 // pred_check_branch
      %16 = sbr.rel (0) target = $region9
    $region8: #{bct_linear_folded.1} parent=1 // pred_region
      _
    $region9: #{bct_linear_folded.1} parent=1 // pred_fallthru
      _
    // Predicated region
    $region10: #{bct_linear_folded.1} parent=1 // pred_check
      _
    $region11: #{bct_linear_folded.1} parent=1 // pred_check_branch
      %18 = sbr.rel (0) target = $region13
    $region12: #{bct_linear_folded.1} parent=1 // pred_region
      _
    $region13: #{bct_linear_folded.1} parent=1 // pred_fallthru
      _
    // Predicated region
    $region14: #{bct_linear_folded.1} parent=1 // pred_check
      _
    $region15: #{bct_linear_folded.1} parent=1 // pred_check_branch
      %20 = sbr.rel (0) target = $region17
    $region16: #{bct_linear_folded.1} parent=1 // pred_region
      _
    $region17: #{bct_linear_folded.1} parent=1 // pred_fallthru
      _
    %p21 = scmp.eq.s32.totalorder 0, 0
    // Predicated region
    $region18: #{bct_linear_folded.1} parent=1 // pred_check
      %p22 = pneg %p21
    $region19: #{bct_linear_folded.1} parent=1 // pred_check_branch
      %24 = sbr.rel (%p22) target = $region21
    $region20: #{bct_linear_folded.1} parent=1 // pred_region
      %25 = vst [vmem:[#allocation2] sm:$0xff] 0.0
      %26 = vst [vmem:[#allocation3] sm:$0xff] 0.0
    $region21: #{bct_linear_folded.1} parent=1 // pred_fallthru
      _
    %v27 = vld [vmem:[%s0] sm:$0xff]
    %v28 = vld [vmem:[%s1] sm:$0xff]
    %v29 = vld [vmem:[%s2] sm:$0xff]
    %v30 = vld [vmem:[%s2 + $0x8] sm:$0xff]
    %v31 = vld [vmem:[%s2 + $0x10] sm:$0xff]
    %v32 = vld [vmem:[%s2 + $0x18] sm:$0xff]
    %v33 = vunpack.c.0.s8 %v29
    %v34 = vunpack.c.1.s8 %v29
    %v35 = vunpack.c.2.s8 %v29
    %v36 = vunpack.c.3.s8 %v29
    %v37 = vunpack.c.0.s8 %v30
    %v38 = vunpack.c.1.s8 %v30
    %v39 = vunpack.c.2.s8 %v30
    %v40 = vunpack.c.3.s8 %v30
    %v41 = vunpack.c.0.s8 %v31
    %v42 = vunpack.c.1.s8 %v31
    %v43 = vunpack.c.2.s8 %v31
    %v44 = vunpack.c.3.s8 %v31
    %v45 = vunpack.c.0.s8 %v32
    %v46 = vunpack.c.1.s8 %v32
    %v47 = vunpack.c.2.s8 %v32
    %v48 = vunpack.c.3.s8 %v32
    %v49 = vcvt.s32.f32 %v33
    %v50 = vcvt.s32.f32 %v34
    %v51 = vcvt.s32.f32 %v35
    %v52 = vcvt.s32.f32 %v36
    %v53 = vcvt.s32.f32 %v37
    %v54 = vcvt.s32.f32 %v38
    %v55 = vcvt.s32.f32 %v39
    %v56 = vcvt.s32.f32 %v40
    %v57 = vcvt.s32.f32 %v41
    %v58 = vcvt.s32.f32 %v42
    %v59 = vcvt.s32.f32 %v43
    %v60 = vcvt.s32.f32 %v44
    %v61 = vcvt.s32.f32 %v45
    %v62 = vcvt.s32.f32 %v46
    %v63 = vcvt.s32.f32 %v47
    %v64 = vcvt.s32.f32 %v48
    %v65 = vld [vmem:[%s3] sm:$0xff]
    %v66 = vld [vmem:[%s3 + $0x8] sm:$0xff]
    %v67 = vld [vmem:[%s3 + $0x10] sm:$0xff]
    %v68 = vld [vmem:[%s3 + $0x18] sm:$0xff]
    %v69 = vunpack.c.0.s8 %v65
    %v70 = vunpack.c.1.s8 %v65
    %v71 = vunpack.c.2.s8 %v65
    %v72 = vunpack.c.3.s8 %v65
    %v73 = vunpack.c.0.s8 %v66
    %v74 = vunpack.c.1.s8 %v66
    %v75 = vunpack.c.2.s8 %v66
    %v76 = vunpack.c.3.s8 %v66
    %v77 = vunpack.c.0.s8 %v67
    %v78 = vunpack.c.1.s8 %v67
    %v79 = vunpack.c.2.s8 %v67
    %v80 = vunpack.c.3.s8 %v67
    %v81 = vunpack.c.0.s8 %v68
    %v82 = vunpack.c.1.s8 %v68
    %v83 = vunpack.c.2.s8 %v68
    %v84 = vunpack.c.3.s8 %v68
    %v85 = vcvt.s32.f32 %v69
    %v86 = vcvt.s32.f32 %v70
    %v87 = vcvt.s32.f32 %v71
    %v88 = vcvt.s32.f32 %v72
    %v89 = vcvt.s32.f32 %v73
    %v90 = vcvt.s32.f32 %v74
    %v91 = vcvt.s32.f32 %v75
    %v92 = vcvt.s32.f32 %v76
    %v93 = vcvt.s32.f32 %v77
    %v94 = vcvt.s32.f32 %v78
    %v95 = vcvt.s32.f32 %v79
    %v96 = vcvt.s32.f32 %v80
    %v97 = vcvt.s32.f32 %v81
    %v98 = vcvt.s32.f32 %v82
    %v99 = vcvt.s32.f32 %v83
    %v100 = vcvt.s32.f32 %v84
    %v101 = vld [vmem:[#allocation2] sm:$0xff]
    %102 = vmatprep.subr.mxu0 0.0
    %103 = vmatpush1.xpose.msra.mxu0 %v64
    %104 = vmatprep.subr.mxu0 0.0
    %105 = vmatpush1.xpose.msra.mxu0 %v63
    %106 = vmatprep.subr.mxu0 0.0
    %107 = vmatpush1.xpose.msra.mxu0 %v62
    %108 = vmatprep.subr.mxu0 0.0
    %109 = vmatpush1.xpose.msra.mxu0 %v61
    %110 = vmatprep.subr.mxu0 0.0
    %111 = vmatpush1.xpose.msra.mxu0 %v60
    %112 = vmatprep.subr.mxu0 0.0
    %113 = vmatpush1.xpose.msra.mxu0 %v59
    %114 = vmatprep.subr.mxu0 0.0
    %115 = vmatpush1.xpose.msra.mxu0 %v58
    %116 = vmatprep.subr.mxu0 0.0
    %117 = vmatpush1.xpose.msra.mxu0 %v57
    %118 = vmatprep.subr.mxu0 0.0
    %119 = vmatpush1.xpose.msra.mxu0 %v56
    %120 = vmatprep.subr.mxu0 0.0
    %121 = vmatpush1.xpose.msra.mxu0 %v55
    %122 = vmatprep.subr.mxu0 0.0
    %123 = vmatpush1.xpose.msra.mxu0 %v54
    %124 = vmatprep.subr.mxu0 0.0
    %125 = vmatpush1.xpose.msra.mxu0 %v53
    %126 = vmatprep.subr.mxu0 0.0
    %127 = vmatpush1.xpose.msra.mxu0 %v52
    %128 = vmatprep.subr.mxu0 0.0
    %129 = vmatpush1.xpose.msra.mxu0 %v51
    %130 = vmatprep.subr.mxu0 0.0
    %131 = vmatpush1.xpose.msra.mxu0 %v50
    %132 = vmatprep.subr.mxu0 0.0
    %133 = vmatpush1.xpose.msra.mxu0 %v49
    %134 = vmatprep.subr.mxu0 0.0
    %135 = vmatpush2.xpose.msra.mxu0 0.0
    %136 = vmatprep.subr.mxu0 0.0
    %137 = vmatpush2.xpose.msra.mxu0 0.0
    %138 = vmatprep.subr.mxu0 0.0
    %139 = vmatpush2.xpose.msra.mxu0 0.0
    %140 = vmatprep.subr.mxu0 0.0
    %141 = vmatpush2.xpose.msra.mxu0 0.0
    %142 = vmatprep.subr.mxu0 0.0
    %143 = vmatpush2.xpose.msra.mxu0 0.0
    %144 = vmatprep.subr.mxu0 0.0
    %145 = vmatpush2.xpose.msra.mxu0 0.0
    %146 = vmatprep.subr.mxu0 0.0
    %147 = vmatpush2.xpose.msra.mxu0 0.0
    %148 = vmatprep.subr.mxu0 0.0
    %149 = vmatpush2.xpose.msra.mxu0 0.0
    %150 = vmatprep.subr.mxu0 0.0
    %151 = vmatpush2.xpose.msra.mxu0 0.0
    %152 = vmatprep.subr.mxu0 0.0
    %153 = vmatpush2.xpose.msra.mxu0 0.0
    %154 = vmatprep.subr.mxu0 0.0
    %155 = vmatpush2.xpose.msra.mxu0 0.0
    %156 = vmatprep.subr.mxu0 0.0
    %157 = vmatpush2.xpose.msra.mxu0 0.0
    %158 = vmatprep.subr.mxu0 0.0
    %159 = vmatpush2.xpose.msra.mxu0 0.0
    %160 = vmatprep.subr.mxu0 0.0
    %161 = vmatpush2.xpose.msra.mxu0 0.0
    %162 = vmatprep.subr.mxu0 0.0
    %163 = vmatpush2.xpose.msra.mxu0 0.0
    %164 = vmatprep.subr.mxu0 0.0
    %165 = vmatpush2.xpose.msra.mxu0 0.0
    %166 = vmatprep.mubr.f32.mxu0 0.0
    %167 = vmatmul.mubr.f32.gmra.mxu0 %v27
    %v168 = vpop.f32.mrf.mxu0
    %v169 = vadd.f32 0.0, %v168
    %v170 = vpop.f32.mrf.mxu0
    %171 = vdwg.mxu0
    %172 = vmatprep.subr.mxu0 0.0
    %173 = vmatpush1.xpose.msra.mxu0 %v100
    %174 = vmatprep.subr.mxu0 0.0
    %175 = vmatpush1.xpose.msra.mxu0 %v99
    %176 = vmatprep.subr.mxu0 0.0
    %177 = vmatpush1.xpose.msra.mxu0 %v98
    %178 = vmatprep.subr.mxu0 0.0
    %179 = vmatpush1.xpose.msra.mxu0 %v97
    %180 = vmatprep.subr.mxu0 0.0
    %181 = vmatpush1.xpose.msra.mxu0 %v96
    %182 = vmatprep.subr.mxu0 0.0
    %183 = vmatpush1.xpose.msra.mxu0 %v95
    %184 = vmatprep.subr.mxu0 0.0
    %185 = vmatpush1.xpose.msra.mxu0 %v94
    %186 = vmatprep.subr.mxu0 0.0
    %187 = vmatpush1.xpose.msra.mxu0 %v93
    %188 = vmatprep.subr.mxu0 0.0
    %189 = vmatpush1.xpose.msra.mxu0 %v92
    %190 = vmatprep.subr.mxu0 0.0
    %191 = vmatpush1.xpose.msra.mxu0 %v91
    %192 = vmatprep.subr.mxu0 0.0
    %193 = vmatpush1.xpose.msra.mxu0 %v90
    %194 = vmatprep.subr.mxu0 0.0
    %195 = vmatpush1.xpose.msra.mxu0 %v89
    %196 = vmatprep.subr.mxu0 0.0
    %197 = vmatpush1.xpose.msra.mxu0 %v88
    %198 = vmatprep.subr.mxu0 0.0
    %199 = vmatpush1.xpose.msra.mxu0 %v87
    %200 = vmatprep.subr.mxu0 0.0
    %201 = vmatpush1.xpose.msra.mxu0 %v86
    %202 = vmatprep.subr.mxu0 0.0
    %203 = vmatpush1.xpose.msra.mxu0 %v85
    %204 = vmatprep.subr.mxu0 0.0
    %205 = vmatpush2.xpose.msra.mxu0 0.0
    %206 = vmatprep.subr.mxu0 0.0
    %207 = vmatpush2.xpose.msra.mxu0 0.0
    %208 = vmatprep.subr.mxu0 0.0
    %209 = vmatpush2.xpose.msra.mxu0 0.0
    %210 = vmatprep.subr.mxu0 0.0
    %211 = vmatpush2.xpose.msra.mxu0 0.0
    %212 = vmatprep.subr.mxu0 0.0
    %213 = vmatpush2.xpose.msra.mxu0 0.0
    %214 = vmatprep.subr.mxu0 0.0
    %215 = vmatpush2.xpose.msra.mxu0 0.0
    %216 = vmatprep.subr.mxu0 0.0
    %217 = vmatpush2.xpose.msra.mxu0 0.0
    %218 = vmatprep.subr.mxu0 0.0
    %219 = vmatpush2.xpose.msra.mxu0 0.0
    %220 = vmatprep.subr.mxu0 0.0
    %221 = vmatpush2.xpose.msra.mxu0 0.0
    %222 = vmatprep.subr.mxu0 0.0
    %223 = vmatpush2.xpose.msra.mxu0 0.0
    %224 = vmatprep.subr.mxu0 0.0
    %225 = vmatpush2.xpose.msra.mxu0 0.0
    %226 = vmatprep.subr.mxu0 0.0
    %227 = vmatpush2.xpose.msra.mxu0 0.0
    %228 = vmatprep.subr.mxu0 0.0
    %229 = vmatpush2.xpose.msra.mxu0 0.0
    %230 = vmatprep.subr.mxu0 0.0
    %231 = vmatpush2.xpose.msra.mxu0 0.0
    %232 = vmatprep.subr.mxu0 0.0
    %233 = vmatpush2.xpose.msra.mxu0 0.0
    %234 = vmatprep.subr.mxu0 0.0
    %235 = vmatpush2.xpose.msra.mxu0 0.0
    %236 = vmatprep.mubr.f32.mxu0 0.0
    %237 = vmatmul.mubr.f32.gmra.mxu0 %v28
    %v238 = vpop.f32.mrf.mxu0
    %v239 = vadd.f32 0.0, %v238
    %v240 = vpop.f32.mrf.mxu0
    %241 = vdwg.mxu0
    %v242 = vsub.f32 %v169, %v239
    %v243 = vadd.f32 %v101, %v242
    %244 = vst [vmem:[#allocation2] sm:$0xff] %v243
    %v245 = vld [vmem:[#allocation3] sm:$0xff]
    %246 = vmatprep.subr.mxu0 0.0
    %247 = vmatpush1.xpose.msra.mxu0 %v64
    %248 = vmatprep.subr.mxu0 0.0
    %249 = vmatpush1.xpose.msra.mxu0 %v63
    %250 = vmatprep.subr.mxu0 0.0
    %251 = vmatpush1.xpose.msra.mxu0 %v62
    %252 = vmatprep.subr.mxu0 0.0
    %253 = vmatpush1.xpose.msra.mxu0 %v61
    %254 = vmatprep.subr.mxu0 0.0
    %255 = vmatpush1.xpose.msra.mxu0 %v60
    %256 = vmatprep.subr.mxu0 0.0
    %257 = vmatpush1.xpose.msra.mxu0 %v59
    %258 = vmatprep.subr.mxu0 0.0
    %259 = vmatpush1.xpose.msra.mxu0 %v58
    %260 = vmatprep.subr.mxu0 0.0
    %261 = vmatpush1.xpose.msra.mxu0 %v57
    %262 = vmatprep.subr.mxu0 0.0
    %263 = vmatpush1.xpose.msra.mxu0 %v56
    %264 = vmatprep.subr.mxu0 0.0
    %265 = vmatpush1.xpose.msra.mxu0 %v55
    %266 = vmatprep.subr.mxu0 0.0
    %267 = vmatpush1.xpose.msra.mxu0 %v54
    %268 = vmatprep.subr.mxu0 0.0
    %269 = vmatpush1.xpose.msra.mxu0 %v53
    %270 = vmatprep.subr.mxu0 0.0
    %271 = vmatpush1.xpose.msra.mxu0 %v52
    %272 = vmatprep.subr.mxu0 0.0
    %273 = vmatpush1.xpose.msra.mxu0 %v51
    %274 = vmatprep.subr.mxu0 0.0
    %275 = vmatpush1.xpose.msra.mxu0 %v50
    %276 = vmatprep.subr.mxu0 0.0
    %277 = vmatpush1.xpose.msra.mxu0 %v49
    %278 = vmatprep.subr.mxu0 0.0
    %279 = vmatpush2.xpose.msra.mxu0 0.0
    %280 = vmatprep.subr.mxu0 0.0
    %281 = vmatpush2.xpose.msra.mxu0 0.0
    %282 = vmatprep.subr.mxu0 0.0
    %283 = vmatpush2.xpose.msra.mxu0 0.0
    %284 = vmatprep.subr.mxu0 0.0
    %285 = vmatpush2.xpose.msra.mxu0 0.0
    %286 = vmatprep.subr.mxu0 0.0
    %287 = vmatpush2.xpose.msra.mxu0 0.0
    %288 = vmatprep.subr.mxu0 0.0
    %289 = vmatpush2.xpose.msra.mxu0 0.0
    %290 = vmatprep.subr.mxu0 0.0
    %291 = vmatpush2.xpose.msra.mxu0 0.0
    %292 = vmatprep.subr.mxu0 0.0
    %293 = vmatpush2.xpose.msra.mxu0 0.0
    %294 = vmatprep.subr.mxu0 0.0
    %295 = vmatpush2.xpose.msra.mxu0 0.0
    %296 = vmatprep.subr.mxu0 0.0
    %297 = vmatpush2.xpose.msra.mxu0 0.0
    %298 = vmatprep.subr.mxu0 0.0
    %299 = vmatpush2.xpose.msra.mxu0 0.0
    %300 = vmatprep.subr.mxu0 0.0
    %301 = vmatpush2.xpose.msra.mxu0 0.0
    %302 = vmatprep.subr.mxu0 0.0
    %303 = vmatpush2.xpose.msra.mxu0 0.0
    %304 = vmatprep.subr.mxu0 0.0
    %305 = vmatpush2.xpose.msra.mxu0 0.0
    %306 = vmatprep.subr.mxu0 0.0
    %307 = vmatpush2.xpose.msra.mxu0 0.0
    %308 = vmatprep.subr.mxu0 0.0
    %309 = vmatpush2.xpose.msra.mxu0 0.0
    %310 = vmatprep.mubr.f32.mxu0 0.0
    %311 = vmatmul.mubr.f32.gmra.mxu0 %v28
    %v312 = vpop.f32.mrf.mxu0
    %v313 = vadd.f32 0.0, %v312
    %v314 = vpop.f32.mrf.mxu0
    %315 = vdwg.mxu0
    %316 = vmatprep.subr.mxu0 0.0
    %317 = vmatpush1.xpose.msra.mxu0 %v100
    %318 = vmatprep.subr.mxu0 0.0
    %319 = vmatpush1.xpose.msra.mxu0 %v99
    %320 = vmatprep.subr.mxu0 0.0
    %321 = vmatpush1.xpose.msra.mxu0 %v98
    %322 = vmatprep.subr.mxu0 0.0
    %323 = vmatpush1.xpose.msra.mxu0 %v97
    %324 = vmatprep.subr.mxu0 0.0
    %325 = vmatpush1.xpose.msra.mxu0 %v96
    %326 = vmatprep.subr.mxu0 0.0
    %327 = vmatpush1.xpose.msra.mxu0 %v95
    %328 = vmatprep.subr.mxu0 0.0
    %329 = vmatpush1.xpose.msra.mxu0 %v94
    %330 = vmatprep.subr.mxu0 0.0
    %331 = vmatpush1.xpose.msra.mxu0 %v93
    %332 = vmatprep.subr.mxu0 0.0
    %333 = vmatpush1.xpose.msra.mxu0 %v92
    %334 = vmatprep.subr.mxu0 0.0
    %335 = vmatpush1.xpose.msra.mxu0 %v91
    %336 = vmatprep.subr.mxu0 0.0
    %337 = vmatpush1.xpose.msra.mxu0 %v90
    %338 = vmatprep.subr.mxu0 0.0
    %339 = vmatpush1.xpose.msra.mxu0 %v89
    %340 = vmatprep.subr.mxu0 0.0
    %341 = vmatpush1.xpose.msra.mxu0 %v88
    %342 = vmatprep.subr.mxu0 0.0
    %343 = vmatpush1.xpose.msra.mxu0 %v87
    %344 = vmatprep.subr.mxu0 0.0
    %345 = vmatpush1.xpose.msra.mxu0 %v86
    %346 = vmatprep.subr.mxu0 0.0
    %347 = vmatpush1.xpose.msra.mxu0 %v85
    %348 = vmatprep.subr.mxu0 0.0
    %349 = vmatpush2.xpose.msra.mxu0 0.0
    %350 = vmatprep.subr.mxu0 0.0
    %351 = vmatpush2.xpose.msra.mxu0 0.0
    %352 = vmatprep.subr.mxu0 0.0
    %353 = vmatpush2.xpose.msra.mxu0 0.0
    %354 = vmatprep.subr.mxu0 0.0
    %355 = vmatpush2.xpose.msra.mxu0 0.0
    %356 = vmatprep.subr.mxu0 0.0
    %357 = vmatpush2.xpose.msra.mxu0 0.0
    %358 = vmatprep.subr.mxu0 0.0
    %359 = vmatpush2.xpose.msra.mxu0 0.0
    %360 = vmatprep.subr.mxu0 0.0
    %361 = vmatpush2.xpose.msra.mxu0 0.0
    %362 = vmatprep.subr.mxu0 0.0
    %363 = vmatpush2.xpose.msra.mxu0 0.0
    %364 = vmatprep.subr.mxu0 0.0
    %365 = vmatpush2.xpose.msra.mxu0 0.0
    %366 = vmatprep.subr.mxu0 0.0
    %367 = vmatpush2.xpose.msra.mxu0 0.0
    %368 = vmatprep.subr.mxu0 0.0
    %369 = vmatpush2.xpose.msra.mxu0 0.0
    %370 = vmatprep.subr.mxu0 0.0
    %371 = vmatpush2.xpose.msra.mxu0 0.0
    %372 = vmatprep.subr.mxu0 0.0
    %373 = vmatpush2.xpose.msra.mxu0 0.0
    %374 = vmatprep.subr.mxu0 0.0
    %375 = vmatpush2.xpose.msra.mxu0 0.0
    %376 = vmatprep.subr.mxu0 0.0
    %377 = vmatpush2.xpose.msra.mxu0 0.0
    %378 = vmatprep.subr.mxu0 0.0
    %379 = vmatpush2.xpose.msra.mxu0 0.0
    %380 = vmatprep.mubr.f32.mxu0 0.0
    %381 = vmatmul.mubr.f32.gmra.mxu0 %v27
    %v382 = vpop.f32.mrf.mxu0
    %v383 = vadd.f32 %v313, %v382
    %v384 = vpop.f32.mrf.mxu0
    %385 = vdwg.mxu0
    %v386 = vadd.f32 %v245, %v383
    %387 = vst [vmem:[#allocation3] sm:$0xff] %v386
    // Predicated region
    $region22: #{bct_linear_folded.1} parent=1 // pred_check
      %p388 = pneg %p21
    $region23: #{bct_linear_folded.1} parent=1 // pred_check_branch
      %390 = sbr.rel (%p388) target = $region25
    $region24: #{bct_linear_folded.1} parent=1 // pred_region
      %v391 = vld [vmem:[#allocation2] sm:$0xff]
      %v392 = vmul.f32 %v391, 0.5
      %393 = vst [vmem:[#allocation4] sm:$0xff] %v392
      %v394 = vld [vmem:[#allocation3] sm:$0xff]
      %v395 = vmul.f32 %v394, 0.5
      %396 = vst [vmem:[#allocation6] sm:$0xff] %v395
    $region25: #{bct_linear_folded.1} parent=1 // pred_fallthru
      _
    // Predicated region
    $region26: #{bct_linear_folded.1} parent=1 // pred_check
      _
    $region27: #{bct_linear_folded.1} parent=1 // pred_check_branch
      %398 = sbr.rel (0) target = $region29
    $region28: #{bct_linear_folded.1} parent=1 // pred_region
      %s400 = ssub.s32 128, 128
      %401 = vsyncadd [#allocation5], %s400
      %s403 = sshll.u32 [#allocation4], 4
      %s404 = int_to_ptr.vmem [resolvable:$true] %s403
      %406 = dma.vmem_to_hbm [thread:$0]  %s404, 128, %s4, [#allocation5]
    $region29: #{bct_linear_folded.1} parent=1 // pred_fallthru
      _
    // Predicated region
    $region30: #{bct_linear_folded.1} parent=1 // pred_check
      _
    $region31: #{bct_linear_folded.1} parent=1 // pred_check_branch
      %408 = sbr.rel (0) target = $region33
    $region32: #{bct_linear_folded.1} parent=1 // pred_region
      %s410 = ssub.s32 128, 128
      %411 = vsyncadd [#allocation7], %s410
      %s413 = sshll.u32 [#allocation6], 4
      %s414 = int_to_ptr.vmem [resolvable:$true] %s413
      %416 = dma.vmem_to_hbm [thread:$0]  %s414, 128, %s5, [#allocation7]
    $region33: #{bct_linear_folded.1} parent=1 // pred_fallthru
      _
    // Predicated region
    $region34: #{bct_linear_folded.1} parent=1 // pred_check
      _
    $region35: #{bct_linear_folded.1} parent=1 // pred_check_branch
      %418 = sbr.rel (0) target = $region37
    $region36: #{bct_linear_folded.1} parent=1 // pred_region
      %419 = dma.done [#allocation5], 128
    $region37: #{bct_linear_folded.1} parent=1 // pred_fallthru
      _
    // Predicated region
    $region38: #{bct_linear_folded.1} parent=1 // pred_check
      _
    $region39: #{bct_linear_folded.1} parent=1 // pred_check_branch
      %421 = sbr.rel (0) target = $region41
    $region40: #{bct_linear_folded.1} parent=1 // pred_region
      %422 = dma.done [#allocation7], 128
    $region41: #{bct_linear_folded.1} parent=1 // pred_fallthru
      _
    %423 = vsyncpa [#allocation5], 1
    %424 = vsyncpa [#allocation7], 1

</llo_original>
